<compile_context>
chip_gen: v7x
topology: tpu7x:2x2x1
jax: 0.10.0
libtpu: 0.0.40
codegen_flags: <defaults>
</compile_context>

<pallas_src>
import jax
import jax.numpy as jnp
from jax.experimental import pallas as pl
from jax.experimental.pallas import tpu as pltpu

NEG_SLOPE = 0.01  # PyTorch LeakyReLU default negative_slope


def _leaky_relu(v):
    return jnp.where(v >= 0, v, NEG_SLOPE * v)


def text_mel_classifier_kernel(corr_ref, emb_ref, w1m_ref, w1e_ref, w2_ref,
                               w3c_ref, o_ref):
    # Channel-major activations: (C, tT).  PyTorch Linear weight (out, in) is
    # applied directly as  h = W @ x  == (x^T @ W^T)^T  -> no transposes.
    corr = corr_ref[0, :, :]                        # (n_mels,    tT) bf16
    emb = emb_ref[0, :, :]                          # (inter_dim, tT) bf16

    # Linear 1 (bias=False); concat folded into two bf16 matmuls, f32 accum.
    h = (jnp.dot(w1m_ref[...], corr, preferred_element_type=jnp.float32)
         + jnp.dot(w1e_ref[...], emb, preferred_element_type=jnp.float32))   # (D, tT) f32
    h = _leaky_relu(h)                              # VPU, f32

    # Linear 2 (bias=False): bf16 operands, f32 accumulation.
    h = jnp.dot(w2_ref[...], h.astype(jnp.bfloat16),
                preferred_element_type=jnp.float32)                          # (D, tT) f32
    h = _leaky_relu(h)

    # Linear 3 (out_features=1, bias=False): M=1 -> keep off the MXU.
    # Broadcast-multiply by the 32 coefficients (VPU) + cross-sublane sum (XLU).
    out = jnp.sum(h * w3c_ref[...], axis=0, keepdims=True)                   # (1, tT) f32

    o_ref[0, :, :] = out.astype(o_ref.dtype)


def text_mel_classifier(corrupted, embedding, w1, w2, w3, *, t_tile=2048):
    """corrupted: (B, n_mels, T), embedding: (B, inter_dim, T).
    w1: (inter_dim, n_mels + inter_dim), w2: (inter_dim, inter_dim),
    w3: (1, inter_dim)  -- all in PyTorch nn.Linear (out, in) layout.
    Returns (B, 1, T) float32."""
    B, n_mels, T = corrupted.shape
    _, inter_dim, T2 = embedding.shape
    assert T == T2

    # T tiling: lane-aligned tile at production T, whole T otherwise.
    if T % 128 == 0 and T > t_tile:
        tT = t_tile
    else:
        tT = T
    n_t_tiles = pl.cdiv(T, tT)

    # PyTorch concat order is [corrupted, embedding] along channels -> split W1.
    # bf16 for MXU operands (f32 accumulation is requested in the kernel); the
    # layer-3 coefficients stay f32 because they feed the VPU, not the MXU.
    w1_mel = w1[:, :n_mels].astype(jnp.bfloat16)      # (inter_dim, n_mels)
    w1_emb = w1[:, n_mels:].astype(jnp.bfloat16)      # (inter_dim, inter_dim)
    w2_b = w2.astype(jnp.bfloat16)                    # (inter_dim, inter_dim)
    w3_col = jnp.transpose(w3).astype(jnp.float32)    # (inter_dim, 1)

    corr_b = corrupted.astype(jnp.bfloat16)
    emb_b = embedding.astype(jnp.bfloat16)

    in_specs = [
        pl.BlockSpec((1, n_mels, tT), lambda b, t: (b, 0, t)),
        pl.BlockSpec((1, inter_dim, tT), lambda b, t: (b, 0, t)),
        pl.BlockSpec(w1_mel.shape, lambda b, t: (0, 0)),
        pl.BlockSpec(w1_emb.shape, lambda b, t: (0, 0)),
        pl.BlockSpec(w2_b.shape, lambda b, t: (0, 0)),
        pl.BlockSpec(w3_col.shape, lambda b, t: (0, 0)),
    ]
    out_spec = pl.BlockSpec((1, 1, tT), lambda b, t: (b, 0, t))

    return pl.pallas_call(
        text_mel_classifier_kernel,
        out_shape=jax.ShapeDtypeStruct((B, 1, T), jnp.float32),
        grid_spec=pltpu.PrefetchScalarGridSpec(
            num_scalar_prefetch=0,
            grid=(B, n_t_tiles),
            in_specs=in_specs,
            out_specs=out_spec,
        ),
        compiler_params=pltpu.CompilerParams(
            dimension_semantics=("parallel", "parallel")),
    )(corr_b, emb_b, w1_mel, w1_emb, w2_b, w3_col)


if __name__ == "__main__":
    B, n_mels, inter_dim, T = 2, 16, 32, 8

    key = jax.random.PRNGKey(0)
    k1, k2, k3, k4, k5 = jax.random.split(key, 5)

    corrupted = jax.random.normal(k1, (B, n_mels, T), jnp.float32)
    embedding = jax.random.normal(k2, (B, inter_dim, T), jnp.float32)
    # nn.Linear weight layout: (out_features, in_features), bias=False.
    w1 = jax.random.normal(k3, (inter_dim, inter_dim + n_mels), jnp.float32) * 0.1
    w2 = jax.random.normal(k4, (inter_dim, inter_dim), jnp.float32) * 0.1
    w3 = jax.random.normal(k5, (1, inter_dim), jnp.float32) * 0.1

    out = text_mel_classifier(corrupted, embedding, w1, w2, w3)
    out = jax.block_until_ready(out)
    assert out.shape == (B, 1, T), out.shape
    assert bool(jnp.all(jnp.isfinite(out)))

    def leaky(v):
        return jnp.where(v >= 0, v, NEG_SLOPE * v)

    # Reference 1: mirrors the kernel's math (bf16 operands, f32 accumulation).
    def bf16_f32_matmul(a, b):
        return jnp.dot(a.astype(jnp.bfloat16).astype(jnp.float32),
                       b.astype(jnp.bfloat16).astype(jnp.float32))

    x = jnp.concatenate([corrupted, embedding], axis=1)      # (B, C, T)
    xt = jnp.transpose(x, (0, 2, 1))                         # (B, T, C)
    h = leaky(bf16_f32_matmul(xt, w1.T))
    h = leaky(bf16_f32_matmul(h, w2.T))
    ref_bf16 = jnp.transpose(h @ w3.T, (0, 2, 1))            # (B, 1, T)
    assert bool(jnp.allclose(out, ref_bf16, atol=1e-3, rtol=1e-3)), \
        float(jnp.max(jnp.abs(out - ref_bf16)))

    # Reference 2: full-f32 PyTorch forward (loose tolerance due to bf16 MXU ops).
    hf = leaky(xt @ w1.T)
    hf = leaky(hf @ w2.T)
    ref_f32 = jnp.transpose(hf @ w3.T, (0, 2, 1))
    assert bool(jnp.allclose(out, ref_f32, atol=5e-2, rtol=5e-2)), \
        float(jnp.max(jnp.abs(out - ref_f32)))

    print("KERNEL_OK")
</pallas_src>

<mosaic_0001>
module attributes {stable_mosaic.version = 11 : i64} {
  func.func @text_mel_classifier_kernel(%arg0: i32, %arg1: i32, %arg2: memref<1x16x8xbf16, #tpu.memory_space<vmem>>, %arg3: memref<1x32x8xbf16, #tpu.memory_space<vmem>>, %arg4: memref<32x16xbf16, #tpu.memory_space<vmem>>, %arg5: memref<32x32xbf16, #tpu.memory_space<vmem>>, %arg6: memref<32x32xbf16, #tpu.memory_space<vmem>>, %arg7: memref<32x1xf32, #tpu.memory_space<vmem>>, %arg8: memref<1x1x8xf32, #tpu.memory_space<vmem>>) attributes {dimension_semantics = [#tpu.dimension_semantics<parallel>, #tpu.dimension_semantics<parallel>], iteration_bounds = array<i64: 2, 1>, scalar_prefetch = 0 : i64, scratch_operands = 0 : i64, tpu.core_type = #tpu.core_type<tc>, window_params = [{transform_indices = @transform_0, window_bounds = array<i64: 1, 16, 8>}, {transform_indices = @transform_1, window_bounds = array<i64: 1, 32, 8>}, {pipeline_mode = #tpu.pipeline_mode<synchronous>, transform_indices = @transform_2, window_bounds = array<i64: 32, 16>}, {pipeline_mode = #tpu.pipeline_mode<synchronous>, transform_indices = @transform_3, window_bounds = array<i64: 32, 32>}, {pipeline_mode = #tpu.pipeline_mode<synchronous>, transform_indices = @transform_4, window_bounds = array<i64: 32, 32>}, {pipeline_mode = #tpu.pipeline_mode<synchronous>, transform_indices = @transform_5, window_bounds = array<i64: 32, 1>}, {transform_indices = @transform_6, window_bounds = array<i64: 1, 1, 8>}]} {
    %c0 = arith.constant 0 : index
    %c0_0 = arith.constant 0 : index
    %c0_1 = arith.constant 0 : index
    %0 = vector.load %arg2[%c0, %c0_0, %c0_1] : memref<1x16x8xbf16, #tpu.memory_space<vmem>>, vector<1x16x8xbf16>
    %1 = vector.shape_cast %0 : vector<1x16x8xbf16> to vector<16x8xbf16>
    %c0_2 = arith.constant 0 : index
    %c0_3 = arith.constant 0 : index
    %c0_4 = arith.constant 0 : index
    %2 = vector.load %arg3[%c0_2, %c0_3, %c0_4] : memref<1x32x8xbf16, #tpu.memory_space<vmem>>, vector<1x32x8xbf16>
    %3 = vector.shape_cast %2 : vector<1x32x8xbf16> to vector<32x8xbf16>
    %c0_5 = arith.constant 0 : index
    %c0_6 = arith.constant 0 : index
    %4 = vector.load %arg4[%c0_5, %c0_6] : memref<32x16xbf16, #tpu.memory_space<vmem>>, vector<32x16xbf16>
    %cst = arith.constant dense<0.000000e+00> : vector<32x8xf32>
    %5 = tpu.matmul %4, %1, %cst {dimension_numbers = #tpu.dot_dimension_numbers<[1], [0], [0], [1], [0, 0, 1, 1], [], []>} : vector<32x16xbf16>, vector<16x8xbf16>, vector<32x8xf32> -> vector<32x8xf32>
    %c0_7 = arith.constant 0 : index
    %c0_8 = arith.constant 0 : index
    %6 = vector.load %arg5[%c0_7, %c0_8] : memref<32x32xbf16, #tpu.memory_space<vmem>>, vector<32x32xbf16>
    %cst_9 = arith.constant dense<0.000000e+00> : vector<32x8xf32>
    %7 = tpu.matmul %6, %3, %cst_9 {dimension_numbers = #tpu.dot_dimension_numbers<[1], [0], [0], [1], [0, 0, 1, 1], [], []>} : vector<32x32xbf16>, vector<32x8xbf16>, vector<32x8xf32> -> vector<32x8xf32>
    %8 = arith.addf %5, %7 : vector<32x8xf32>
    %cst_10 = arith.constant 0.000000e+00 : f32
    %9 = vector.broadcast %cst_10 : f32 to vector<32x8xf32>
    %10 = arith.cmpf oge, %8, %9 : vector<32x8xf32>
    %cst_11 = arith.constant 0.00999999977 : f32
    %11 = vector.broadcast %cst_11 : f32 to vector<32x8xf32>
    %12 = arith.mulf %11, %8 : vector<32x8xf32>
    %13 = arith.select %10, %8, %12 : vector<32x8xi1>, vector<32x8xf32>
    %c0_12 = arith.constant 0 : index
    %c0_13 = arith.constant 0 : index
    %14 = vector.load %arg6[%c0_12, %c0_13] : memref<32x32xbf16, #tpu.memory_space<vmem>>, vector<32x32xbf16>
    %15 = arith.truncf %13 : vector<32x8xf32> to vector<32x8xbf16>
    %cst_14 = arith.constant dense<0.000000e+00> : vector<32x8xf32>
    %16 = tpu.matmul %14, %15, %cst_14 {dimension_numbers = #tpu.dot_dimension_numbers<[1], [0], [0], [1], [0, 0, 1, 1], [], []>} : vector<32x32xbf16>, vector<32x8xbf16>, vector<32x8xf32> -> vector<32x8xf32>
    %cst_15 = arith.constant 0.000000e+00 : f32
    %17 = vector.broadcast %cst_15 : f32 to vector<32x8xf32>
    %18 = arith.cmpf oge, %16, %17 : vector<32x8xf32>
    %cst_16 = arith.constant 0.00999999977 : f32
    %19 = vector.broadcast %cst_16 : f32 to vector<32x8xf32>
    %20 = arith.mulf %19, %16 : vector<32x8xf32>
    %21 = arith.select %18, %16, %20 : vector<32x8xi1>, vector<32x8xf32>
    %c0_17 = arith.constant 0 : index
    %c0_18 = arith.constant 0 : index
    %22 = vector.load %arg7[%c0_17, %c0_18] : memref<32x1xf32, #tpu.memory_space<vmem>>, vector<32x1xf32>
    %23 = vector.broadcast %22 : vector<32x1xf32> to vector<32x8xf32>
    %24 = arith.mulf %21, %23 : vector<32x8xf32>
    %cst_19 = arith.constant dense<0.000000e+00> : vector<8xf32>
    %25 = vector.multi_reduction <add>, %24, %cst_19 [0] : vector<32x8xf32> to vector<8xf32>
    %26 = vector.shape_cast %25 : vector<8xf32> to vector<1x8xf32>
    %c0_20 = arith.constant 0 : index
    %c0_21 = arith.constant 0 : index
    %c0_22 = arith.constant 0 : index
    %27 = vector.load %arg8[%c0_20, %c0_21, %c0_22] : memref<1x1x8xf32, #tpu.memory_space<vmem>>, vector<1x1x8xf32>
    %28 = vector.shape_cast %27 : vector<1x1x8xf32> to vector<1x8xf32>
    %29 = vector.shape_cast %26 : vector<1x8xf32> to vector<1x1x8xf32>
    tpu.vector_store %arg8[%c0_20, %c0_21, %c0_22], %29 {strides = array<i32>} : memref<1x1x8xf32, #tpu.memory_space<vmem>>, vector<1x1x8xf32>,
    return
  }
  func.func @transform_0(%arg0: i32, %arg1: i32) -> (i32, i32, i32) {
    %c0_i32 = arith.constant 0 : i32
    %c0_i32_0 = arith.constant 0 : i32
    return %arg0, %c0_i32, %arg1 : i32, i32, i32
  }
  func.func @transform_1(%arg0: i32, %arg1: i32) -> (i32, i32, i32) {
    %c0_i32 = arith.constant 0 : i32
    %c0_i32_0 = arith.constant 0 : i32
    return %arg0, %c0_i32, %arg1 : i32, i32, i32
  }
  func.func @transform_2(%arg0: i32, %arg1: i32) -> (i32, i32) {
    %c0_i32 = arith.constant 0 : i32
    %c0_i32_0 = arith.constant 0 : i32
    %c0_i32_1 = arith.constant 0 : i32
    return %c0_i32, %c0_i32_0 : i32, i32
  }
  func.func @transform_3(%arg0: i32, %arg1: i32) -> (i32, i32) {
    %c0_i32 = arith.constant 0 : i32
    %c0_i32_0 = arith.constant 0 : i32
    %c0_i32_1 = arith.constant 0 : i32
    return %c0_i32, %c0_i32_0 : i32, i32
  }
  func.func @transform_4(%arg0: i32, %arg1: i32) -> (i32, i32) {
    %c0_i32 = arith.constant 0 : i32
    %c0_i32_0 = arith.constant 0 : i32
    %c0_i32_1 = arith.constant 0 : i32
    return %c0_i32, %c0_i32_0 : i32, i32
  }
  func.func @transform_5(%arg0: i32, %arg1: i32) -> (i32, i32) {
    %c0_i32 = arith.constant 0 : i32
    %c0_i32_0 = arith.constant 0 : i32
    %c0_i32_1 = arith.constant 0 : i32
    return %c0_i32, %c0_i32_0 : i32, i32
  }
  func.func @transform_6(%arg0: i32, %arg1: i32) -> (i32, i32, i32) {
    %c0_i32 = arith.constant 0 : i32
    %c0_i32_0 = arith.constant 0 : i32
    return %arg0, %c0_i32, %arg1 : i32, i32, i32
  }
}

</mosaic_0001>

<llo_original>
// kernel: tpu_custom_call.1
$region0: #{tpu_custom_call.1}
  #allocation0 [shape = 'u32[]', space=smem, size = 0x4, offset = 0x4, fixed_abs, tag = 'smem constant byte address 0x4 - core index']
  #allocation1 [shape = 'u32[144,128]{1,0:T(1,128)}', space=vmem, size = 0x12000, scoped, tag = 'internal scratch']
  %s0 = inlined_call_operand.vmem [shape: bf16[2,16,8], index: 0, kind: input, shape index: {}]
  %s1 = inlined_call_operand.vmem [shape: bf16[2,32,8], index: 1, kind: input, shape index: {}]
  %s2 = inlined_call_operand.vmem [shape: bf16[32,16], index: 2, kind: input, shape index: {}]
  %s3 = inlined_call_operand.vmem [shape: bf16[32,32], index: 3, kind: input, shape index: {}]
  %s4 = inlined_call_operand.vmem [shape: bf16[32,32], index: 4, kind: input, shape index: {}]
  %s5 = inlined_call_operand.vmem [shape: f32[32,1], index: 5, kind: input, shape index: {}]
  %s6 = inlined_call_operand.hbm [shape: f32[2,1,8], index: 6, kind: output, shape index: {}]
  %s7 = sld [smem:[#allocation0]]
  $region57: #{tpu_custom_call.1} parent=0
    _
  %s9 = ssub.s32 1, %s7
  %s10 = scalar_select 0, %s9, %s7
  $region1: #{tpu_custom_call.1} parent=0
    #allocation2 [shape = 'u8[1024]{0}', space=vmem, size = 0x400, scoped, tag = 'output window, operand 0']
    #allocation3 [shape = 's32[2]{0}', space=sflag, size = 0x8, scoped, tag = 'scoped memory for tpu_custom_call.1']
    %11 = vsyncpa [#allocation3], 0
    %s12 = scalar_lea.sflag [#allocation3], 1
    %13 = vsyncpa %s12, 0
    loop: start=0, step=1, limit=4
    $region2: #{tpu_custom_call.1} parent=1 // loop_pre_header
      _
    $region3: #{tpu_custom_call.1} parent=1 // loop_header
      %s15 = sphi 0, %s19
      %p16 = scmp.ge.s32.totalorder %s15, 4
      %s22 = sphi 0, %s34
      %s23 = sphi 0, %s30
      %s24 = sphi 0, %s22
      %s25 = sphi 0, %s23
      %s26 = sphi 0, %s24
      %s27 = sphi 0, %s25
      %s39 = sphi 0, %s41
      %s42 = sphi 0, %s39
      %s43 = sphi 0, %s42
      %s59 = sphi 0, %s43
      %s67 = sphi 0, %s69
      %s70 = sphi 0, %s67
      %s71 = sphi 0, %s70
      %s87 = sphi 0, %s71
      %s91 = sphi 0, %s91
      %s93 = sphi 0, %s91
      %s94 = sphi 0, %s93
      %s108 = sphi 0, %s94
      %s112 = sphi 0, %s112
      %s114 = sphi 0, %s112
      %s115 = sphi 0, %s114
      %s129 = sphi 0, %s115
      %s133 = sphi 0, %s133
      %s135 = sphi 0, %s133
      %s136 = sphi 0, %s135
      %s150 = sphi 0, %s136
      %s154 = sphi 0, %s154
      %s156 = sphi 0, %s154
      %s157 = sphi 0, %s156
      %s171 = sphi 0, %s157
      %s179 = sphi 0, %s181
      %s182 = sphi 0, %s179
      %s183 = sphi 0, %s182
      %s199 = sphi 0, %s183
    $region4: #{tpu_custom_call.1} parent=1 // loop_header_branch
      %18 = sbr.rel (%p16) target = $region8
    $region5: #{tpu_custom_call.1} parent=1 // loop_body
      %s20 = ssub.s32 %s15, 1
      %s21 = ssub.s32 %s15, 2
      %s28 = sadd.s32 1, %s23
      %p29 = scmp.ge.s32.totalorder %s28, 1
      %s30 = scalar_select %p29, 0, %s28
      %s31 = sadd.s32 1, %s22
      %s32 = scalar_select %p29, %s31, %s22
      %p33 = scmp.ge.s32.totalorder %s32, 2
      %s34 = scalar_select %p33, 0, %s32
      %s35 = ssub.s32 %s22, %s34
      %s36 = ssub.s32 %s23, %s30
      %s37 = sor.u32 %s35, %s36
      %p38 = scmp.eq.s32.totalorder %s37, 0
      %s40 = sadd.s32 %s39, 1
      %s41 = scalar_select %p38, %s39, %s40
      %p44 = pneg %p38
      %p45 = scmp.eq.s32.totalorder %s15, 1
      %p46 = por %p44, %p45
      %p47 = scmp.ne.s32.totalorder %s39, %s42
      %p48 = scmp.eq.s32.totalorder %s15, 0
      %p49 = por %p47, %p48
      %p50 = scmp.ne.s32.totalorder %s39, %s42
      %p51 = scmp.eq.s32.totalorder %s20, 1
      %p52 = por %p50, %p51
      %p53 = scmp.ne.s32.totalorder %s42, %s43
      %p54 = scmp.eq.s32.totalorder %s20, 0
      %p55 = por %p53, %p54
      %p56 = scmp.ne.s32.totalorder %s42, %s43
      %p57 = scmp.eq.s32.totalorder %s21, 1
      %p58 = por %p56, %p57
      %p60 = scmp.ne.s32.totalorder %s43, %s59
      %p61 = scmp.eq.s32.totalorder %s21, 0
      %p62 = por %p60, %p61
      %s63 = ssub.s32 %s22, %s34
      %s64 = ssub.s32 %s23, %s30
      %s65 = sor.u32 %s63, %s64
      %p66 = scmp.eq.s32.totalorder %s65, 0
      %s68 = sadd.s32 %s67, 1
      %s69 = scalar_select %p66, %s67, %s68
      %p72 = pneg %p66
      %p73 = scmp.eq.s32.totalorder %s15, 1
      %p74 = por %p72, %p73
      %p75 = scmp.ne.s32.totalorder %s67, %s70
      %p76 = scmp.eq.s32.totalorder %s15, 0
      %p77 = por %p75, %p76
      %p78 = scmp.ne.s32.totalorder %s67, %s70
      %p79 = scmp.eq.s32.totalorder %s20, 1
      %p80 = por %p78, %p79
      %p81 = scmp.ne.s32.totalorder %s70, %s71
      %p82 = scmp.eq.s32.totalorder %s20, 0
      %p83 = por %p81, %p82
      %p84 = scmp.ne.s32.totalorder %s70, %s71
      %p85 = scmp.eq.s32.totalorder %s21, 1
      %p86 = por %p84, %p85
      %p88 = scmp.ne.s32.totalorder %s71, %s87
      %p89 = scmp.eq.s32.totalorder %s21, 0
      %p90 = por %p88, %p89
      %s92 = sadd.s32 %s91, 1
      %p95 = scmp.eq.s32.totalorder %s15, 1
      %p96 = scmp.ne.s32.totalorder %s91, %s93
      %p97 = scmp.eq.s32.totalorder %s15, 0
      %p98 = por %p96, %p97
      %p99 = scmp.ne.s32.totalorder %s91, %s93
      %p100 = scmp.eq.s32.totalorder %s20, 1
      %p101 = por %p99, %p100
      %p102 = scmp.ne.s32.totalorder %s93, %s94
      %p103 = scmp.eq.s32.totalorder %s20, 0
      %p104 = por %p102, %p103
      %p105 = scmp.ne.s32.totalorder %s93, %s94
      %p106 = scmp.eq.s32.totalorder %s21, 1
      %p107 = por %p105, %p106
      %p109 = scmp.ne.s32.totalorder %s94, %s108
      %p110 = scmp.eq.s32.totalorder %s21, 0
      %p111 = por %p109, %p110
      %s113 = sadd.s32 %s112, 1
      %p116 = scmp.eq.s32.totalorder %s15, 1
      %p117 = scmp.ne.s32.totalorder %s112, %s114
      %p118 = scmp.eq.s32.totalorder %s15, 0
      %p119 = por %p117, %p118
      %p120 = scmp.ne.s32.totalorder %s112, %s114
      %p121 = scmp.eq.s32.totalorder %s20, 1
      %p122 = por %p120, %p121
      %p123 = scmp.ne.s32.totalorder %s114, %s115
      %p124 = scmp.eq.s32.totalorder %s20, 0
      %p125 = por %p123, %p124
      %p126 = scmp.ne.s32.totalorder %s114, %s115
      %p127 = scmp.eq.s32.totalorder %s21, 1
      %p128 = por %p126, %p127
      %p130 = scmp.ne.s32.totalorder %s115, %s129
      %p131 = scmp.eq.s32.totalorder %s21, 0
      %p132 = por %p130, %p131
      %s134 = sadd.s32 %s133, 1
      %p137 = scmp.eq.s32.totalorder %s15, 1
      %p138 = scmp.ne.s32.totalorder %s133, %s135
      %p139 = scmp.eq.s32.totalorder %s15, 0
      %p140 = por %p138, %p139
      %p141 = scmp.ne.s32.totalorder %s133, %s135
      %p142 = scmp.eq.s32.totalorder %s20, 1
      %p143 = por %p141, %p142
      %p144 = scmp.ne.s32.totalorder %s135, %s136
      %p145 = scmp.eq.s32.totalorder %s20, 0
      %p146 = por %p144, %p145
      %p147 = scmp.ne.s32.totalorder %s135, %s136
      %p148 = scmp.eq.s32.totalorder %s21, 1
      %p149 = por %p147, %p148
      %p151 = scmp.ne.s32.totalorder %s136, %s150
      %p152 = scmp.eq.s32.totalorder %s21, 0
      %p153 = por %p151, %p152
      %s155 = sadd.s32 %s154, 1
      %p158 = scmp.eq.s32.totalorder %s15, 1
      %p159 = scmp.ne.s32.totalorder %s154, %s156
      %p160 = scmp.eq.s32.totalorder %s15, 0
      %p161 = por %p159, %p160
      %p162 = scmp.ne.s32.totalorder %s154, %s156
      %p163 = scmp.eq.s32.totalorder %s20, 1
      %p164 = por %p162, %p163
      %p165 = scmp.ne.s32.totalorder %s156, %s157
      %p166 = scmp.eq.s32.totalorder %s20, 0
      %p167 = por %p165, %p166
      %p168 = scmp.ne.s32.totalorder %s156, %s157
      %p169 = scmp.eq.s32.totalorder %s21, 1
      %p170 = por %p168, %p169
      %p172 = scmp.ne.s32.totalorder %s157, %s171
      %p173 = scmp.eq.s32.totalorder %s21, 0
      %p174 = por %p172, %p173
      %s175 = ssub.s32 %s22, %s34
      %s176 = ssub.s32 %s23, %s30
      %s177 = sor.u32 %s175, %s176
      %p178 = scmp.eq.s32.totalorder %s177, 0
      %s180 = sadd.s32 %s179, 1
      %s181 = scalar_select %p178, %s179, %s180
      %p184 = pneg %p178
      %p185 = scmp.eq.s32.totalorder %s15, 1
      %p186 = por %p184, %p185
      %p187 = scmp.ne.s32.totalorder %s179, %s182
      %p188 = scmp.eq.s32.totalorder %s15, 0
      %p189 = por %p187, %p188
      %p190 = scmp.ne.s32.totalorder %s179, %s182
      %p191 = scmp.eq.s32.totalorder %s20, 1
      %p192 = por %p190, %p191
      %p193 = scmp.ne.s32.totalorder %s182, %s183
      %p194 = scmp.eq.s32.totalorder %s20, 0
      %p195 = por %p193, %p194
      %p196 = scmp.ne.s32.totalorder %s182, %s183
      %p197 = scmp.eq.s32.totalorder %s21, 1
      %p198 = por %p196, %p197
      %p200 = scmp.ne.s32.totalorder %s183, %s199
      %p201 = scmp.eq.s32.totalorder %s21, 0
      %p202 = por %p200, %p201
      %p203 = scmp.le.s32.totalorder 1, %s15
      %p204 = scmp.lt.s32.totalorder %s15, 3
      %p205 = pnand %p203, %p204
      %p206 = pneg %p205
      // Predicated region
      $region9: #{tpu_custom_call.1} parent=5 // pred_check
        _
      $region10: #{tpu_custom_call.1} parent=5 // pred_check_branch
        %208 = sbr.rel (%p205) target = $region12
      $region11: #{tpu_custom_call.1} parent=5 // pred_region
        %s209 = ssub.s32 %s15, 1
        // Predicated region
        $region13: #{tpu_custom_call.1} parent=11 // pred_check
          %p210 = pneg %p104
        $region14: #{tpu_custom_call.1} parent=11 // pred_check_branch
          %212 = sbr.rel (%p210) target = $region16
        $region15: #{tpu_custom_call.1} parent=11 // pred_region
          _
        $region16: #{tpu_custom_call.1} parent=11 // pred_fallthru
          _
        // Predicated region
        $region17: #{tpu_custom_call.1} parent=11 // pred_check
          %p213 = pneg %p125
        $region18: #{tpu_custom_call.1} parent=11 // pred_check_branch
          %215 = sbr.rel (%p213) target = $region20
        $region19: #{tpu_custom_call.1} parent=11 // pred_region
          _
        $region20: #{tpu_custom_call.1} parent=11 // pred_fallthru
          _
        // Predicated region
        $region21: #{tpu_custom_call.1} parent=11 // pred_check
          %p216 = pneg %p146
        $region22: #{tpu_custom_call.1} parent=11 // pred_check_branch
          %218 = sbr.rel (%p216) target = $region24
        $region23: #{tpu_custom_call.1} parent=11 // pred_region
          _
        $region24: #{tpu_custom_call.1} parent=11 // pred_fallthru
          _
        // Predicated region
        $region25: #{tpu_custom_call.1} parent=11 // pred_check
          %p219 = pneg %p167
        $region26: #{tpu_custom_call.1} parent=11 // pred_check_branch
          %221 = sbr.rel (%p219) target = $region28
        $region27: #{tpu_custom_call.1} parent=11 // pred_region
          _
        $region28: #{tpu_custom_call.1} parent=11 // pred_fallthru
          _
      $region12: #{tpu_custom_call.1} parent=5 // pred_fallthru
        _
      %p222 = scmp.lt.s32.totalorder %s15, 2
      // Predicated region
      $region29: #{tpu_custom_call.1} parent=5 // pred_check
        %p223 = pneg %p222
      $region30: #{tpu_custom_call.1} parent=5 // pred_check_branch
        %225 = sbr.rel (%p223) target = $region32
      $region31: #{tpu_custom_call.1} parent=5 // pred_region
        // Predicated region
        $region33: #{tpu_custom_call.1} parent=31 // pred_check
          %p226 = pneg %p49
        $region34: #{tpu_custom_call.1} parent=31 // pred_check_branch
          %228 = sbr.rel (%p226) target = $region36
        $region35: #{tpu_custom_call.1} parent=31 // pred_region
          %p229 = scmp.lt.s32.totalorder %s22, 1
          %s230 = scalar_select %p229, %s22, 1
          %p231 = scmp.lt.s32.totalorder %s23, 0
          %s232 = scalar_select %p231, %s23, 0
          %s233 = smul.addr %s230, 2
          %s234 = sadd.s32 %s232, %s233
          %s235 = smul.addr %s234, 4
          %s236 = scalar_lea.vmem %s0, %s235
        $region36: #{tpu_custom_call.1} parent=31 // pred_fallthru
          _
        // Predicated region
        $region37: #{tpu_custom_call.1} parent=31 // pred_check
          %p237 = pneg %p77
        $region38: #{tpu_custom_call.1} parent=31 // pred_check_branch
          %239 = sbr.rel (%p237) target = $region40
        $region39: #{tpu_custom_call.1} parent=31 // pred_region
          %p240 = scmp.lt.s32.totalorder %s22, 1
          %s241 = scalar_select %p240, %s22, 1
          %p242 = scmp.lt.s32.totalorder %s23, 0
          %s243 = scalar_select %p242, %s23, 0
          %s244 = smul.addr %s241, 4
          %s245 = sadd.s32 %s243, %s244
          %s246 = smul.addr %s245, 4
          %s247 = scalar_lea.vmem %s1, %s246
        $region40: #{tpu_custom_call.1} parent=31 // pred_fallthru
          _
      $region32: #{tpu_custom_call.1} parent=5 // pred_fallthru
        _
      %p248 = scmp.le.s32.totalorder 1, %s15
      %p249 = scmp.lt.s32.totalorder %s15, 3
      %p250 = pnand %p248, %p249
      %p251 = pneg %p250
      // Predicated region
      $region41: #{tpu_custom_call.1} parent=5 // pred_check
        _
      $region42: #{tpu_custom_call.1} parent=5 // pred_check_branch
        %253 = sbr.rel (%p250) target = $region44
      $region43: #{tpu_custom_call.1} parent=5 // pred_region
        %s254 = ssub.s32 %s15, 1
        %p255 = scmp.lt.s32.totalorder %s24, 1
        %s256 = scalar_select %p255, %s24, 1
        %p257 = scmp.lt.s32.totalorder %s25, 0
        %s258 = scalar_select %p257, %s25, 0
        %s259 = smul.addr %s256, 2
        %s260 = sadd.s32 %s258, %s259
        %s261 = smul.addr %s260, 4
        %s262 = scalar_lea.vmem %s0, %s261
        %p263 = pneg %p55
        %p264 = pneg %p52
        %p265 = scmp.lt.s32.totalorder %s24, 1
        %s266 = scalar_select %p265, %s24, 1
        %p267 = scmp.lt.s32.totalorder %s25, 0
        %s268 = scalar_select %p267, %s25, 0
        %s269 = smul.addr %s266, 4
        %s270 = sadd.s32 %s268, %s269
        %s271 = smul.addr %s270, 4
        %s272 = scalar_lea.vmem %s1, %s271
        %p273 = pneg %p83
        %p274 = pneg %p80
        %p275 = pneg %p104
        %p276 = pneg %p101
        %p277 = pneg %p125
        %p278 = pneg %p122
        %p279 = pneg %p146
        %p280 = pneg %p143
        %p281 = pneg %p167
        %p282 = pneg %p164
        %p283 = pneg %p195
        %p284 = pneg %p192
        %s285 = sand.u32 %s182, 1
        %s286 = scalar_lea.sflag [#allocation3], %s285
        %s287 = sand.u32 %s182, 1
        %s288 = scalar_lea.vmem [#allocation2], %s287
        %p289 = scmp.lt.s32.totalorder %s24, 1
        %s290 = scalar_select %p289, %s24, 1
        %p291 = scmp.lt.s32.totalorder %s25, 0
        %s292 = scalar_select %p291, %s25, 0
        %s293 = smul.addr %s290, 2
        %s294 = sadd.s32 %s292, %s293
        %s295 = smul.addr %s294, 4
        %s296 = scalar_lea.vmem %s0, %s295
        %p297 = scmp.lt.s32.totalorder %s24, 1
        %s298 = scalar_select %p297, %s24, 1
        %p299 = scmp.lt.s32.totalorder %s25, 0
        %s300 = scalar_select %p299, %s25, 0
        %s301 = smul.addr %s298, 4
        %s302 = sadd.s32 %s300, %s301
        %s303 = smul.addr %s302, 4
        %s304 = scalar_lea.vmem %s1, %s303
        %v306 = vld [vmem:[%s296] sm:$0xf]
        %v307 = vld [vmem:[%s296 + $0x4] sm:$0xf]
        %v308 = vld [vmem:[%s304] sm:$0xf]
        %v309 = vld [vmem:[%s304 + $0x4] sm:$0xf]
        %v310 = vld [vmem:[%s304 + $0x8] sm:$0xf]
        %v311 = vld [vmem:[%s304 + $0xc] sm:$0xf]
        %v312 = vld [vmem:[%s2] sm:$0xf]
        %v313 = vld [vmem:[%s2 + $0x4] sm:$0xf]
        %v314 = vld [vmem:[%s2 + $0x8] sm:$0xf]
        %v315 = vld [vmem:[%s2 + $0xc] sm:$0xf]
        %v316 = vld [vmem:[%s3] sm:$0xf]
        %v317 = vld [vmem:[%s3 + $0x4] sm:$0xf]
        %v318 = vld [vmem:[%s3 + $0x8] sm:$0xf]
        %v319 = vld [vmem:[%s3 + $0xc] sm:$0xf]
        %v324 = vunpack.c.l.b16 %v316
        %v325 = vunpack.c.l.b16 %v317
        %v326 = vunpack.c.l.b16 %v318
        %v327 = vunpack.c.l.b16 %v319
        %v328 = vpack.c.b16 %v325, %v324
        %v329 = vpack.c.b16 %v327, %v326
        %v334 = vunpack.c.l.b16 %v308
        %v335 = vunpack.c.l.b16 %v309
        %v336 = vunpack.c.l.b16 %v310
        %v337 = vunpack.c.l.b16 %v311
        %v338 = vpack.c.b16 %v335, %v334
        %v339 = vpack.c.b16 %v337, %v336
        %vm342 = vcmask 261120
        %v344 = vsel %vm342, %v328, 0
        %v347 = vsel %vm342, %v329, 0
        %349 = vmatprep.subr.bf16.mxu0 0
        %350 = vmatpush1.bf16.msra.mxu0 %v338
        %351 = vmatprep.subr.bf16.mxu0 0
        %352 = vmatpush1.bf16.msra.mxu0 %v339
        %353 = vmatprep.subr.bf16.mxu0 0
        %354 = vmatpush1.bf16.msra.mxu0 0
        %355 = vmatprep.subr.bf16.mxu0 0
        %356 = vmatpush1.bf16.msra.mxu0 0
        %357 = vmatprep.subr.bf16.mxu0 0
        %358 = vmatpush1.bf16.msra.mxu0 0
        %359 = vmatprep.subr.bf16.mxu0 0
        %360 = vmatpush1.bf16.msra.mxu0 0
        %361 = vmatprep.subr.bf16.mxu0 0
        %362 = vmatpush1.bf16.msra.mxu0 0
        %363 = vmatprep.subr.bf16.mxu0 0
        %364 = vmatpush1.bf16.msra.mxu0 0
        %365 = vmatprep.subr.bf16.mxu0 0
        %366 = vmatpush1.bf16.msra.mxu0 0
        %367 = vmatprep.subr.bf16.mxu0 0
        %368 = vmatpush1.bf16.msra.mxu0 0
        %369 = vmatprep.subr.bf16.mxu0 0
        %370 = vmatpush1.bf16.msra.mxu0 0
        %371 = vmatprep.subr.bf16.mxu0 0
        %372 = vmatpush1.bf16.msra.mxu0 0
        %373 = vmatprep.subr.bf16.mxu0 0
        %374 = vmatpush1.bf16.msra.mxu0 0
        %375 = vmatprep.subr.bf16.mxu0 0
        %376 = vmatpush1.bf16.msra.mxu0 0
        %377 = vmatprep.subr.bf16.mxu0 0
        %378 = vmatpush1.bf16.msra.mxu0 0
        %379 = vmatprep.subr.bf16.mxu0 0
        %380 = vmatpush1.bf16.msra.mxu0 0
        %381 = vmatprep.mubr.bf16.mxu0 0
        %382 = vmatmul.mubr.bf16.gmra.mrb[0].mxu0 %v344
        %v383 = vpop.f32.mrb[0].mxu0
        %v384 = vadd.f32 0.0, %v383
        %v385 = vpop.f32.mrb[0].mxu0
        %v386 = vpop.f32.mrb[0].mxu0
        %v387 = vadd.f32 0.0, %v386
        %v388 = vpop.f32.mrb[0].mxu0
        %389 = vmatprep.mubr.bf16.mxu0 0
        %390 = vmatmul.mubr.bf16.gmra.mrb[0].mxu0 %v347
        %v391 = vpop.f32.mrb[0].mxu0
        %v392 = vadd.f32 0.0, %v391
        %v393 = vpop.f32.mrb[0].mxu0
        %v394 = vpop.f32.mrb[0].mxu0
        %v395 = vadd.f32 0.0, %v394
        %v396 = vpop.f32.mrb[0].mxu0
        %397 = vdwg.mxu0
        %v402 = vunpack.c.l.b16 %v312
        %v403 = vunpack.c.l.b16 %v313
        %v404 = vunpack.c.l.b16 %v314
        %v405 = vunpack.c.l.b16 %v315
        %v406 = vpack.c.b16 %v403, %v402
        %v407 = vpack.c.b16 %v405, %v404
        %v410 = vunpack.c.l.b16 %v306
        %v411 = vunpack.c.l.b16 %v307
        %v412 = vpack.c.b16 %v411, %v410
        %vm414 = vcmask 130048
        %v416 = vsel %vm414, %v406, 0
        %v419 = vsel %vm414, %v407, 0
        %421 = vmatprep.subr.bf16.mxu0 0
        %422 = vmatpush1.bf16.msra.mxu0 %v412
        %423 = vmatprep.subr.bf16.mxu0 0
        %424 = vmatpush1.bf16.msra.mxu0 0
        %425 = vmatprep.subr.bf16.mxu0 0
        %426 = vmatpush1.bf16.msra.mxu0 0
        %427 = vmatprep.subr.bf16.mxu0 0
        %428 = vmatpush1.bf16.msra.mxu0 0
        %429 = vmatprep.subr.bf16.mxu0 0
        %430 = vmatpush1.bf16.msra.mxu0 0
        %431 = vmatprep.subr.bf16.mxu0 0
        %432 = vmatpush1.bf16.msra.mxu0 0
        %433 = vmatprep.subr.bf16.mxu0 0
        %434 = vmatpush1.bf16.msra.mxu0 0
        %435 = vmatprep.subr.bf16.mxu0 0
        %436 = vmatpush1.bf16.msra.mxu0 0
        %437 = vmatprep.subr.bf16.mxu0 0
        %438 = vmatpush1.bf16.msra.mxu0 0
        %439 = vmatprep.subr.bf16.mxu0 0
        %440 = vmatpush1.bf16.msra.mxu0 0
        %441 = vmatprep.subr.bf16.mxu0 0
        %442 = vmatpush1.bf16.msra.mxu0 0
        %443 = vmatprep.subr.bf16.mxu0 0
        %444 = vmatpush1.bf16.msra.mxu0 0
        %445 = vmatprep.subr.bf16.mxu0 0
        %446 = vmatpush1.bf16.msra.mxu0 0
        %447 = vmatprep.subr.bf16.mxu0 0
        %448 = vmatpush1.bf16.msra.mxu0 0
        %449 = vmatprep.subr.bf16.mxu0 0
        %450 = vmatpush1.bf16.msra.mxu0 0
        %451 = vmatprep.subr.bf16.mxu0 0
        %452 = vmatpush1.bf16.msra.mxu0 0
        %453 = vmatprep.mubr.bf16.mxu0 0
        %454 = vmatmul.mubr.bf16.gmra.mrb[0].mxu0 %v416
        %v455 = vpop.f32.mrb[0].mxu0
        %v456 = vadd.f32 %v384, %v455
        %v457 = vpop.f32.mrb[0].mxu0
        %v458 = vpop.f32.mrb[0].mxu0
        %v459 = vadd.f32 %v387, %v458
        %v460 = vpop.f32.mrb[0].mxu0
        %461 = vmatprep.mubr.bf16.mxu0 0
        %462 = vmatmul.mubr.bf16.gmra.mrb[0].mxu0 %v419
        %v463 = vpop.f32.mrb[0].mxu0
        %v464 = vadd.f32 %v392, %v463
        %v465 = vpop.f32.mrb[0].mxu0
        %v466 = vpop.f32.mrb[0].mxu0
        %v467 = vadd.f32 %v395, %v466
        %v468 = vpop.f32.mrb[0].mxu0
        %469 = vdwg.mxu0
        %vm470 = vcmp.ge.f32.partialorder %v456, 0.0
        %vm471 = vcmp.ge.f32.partialorder %v459, 0.0
        %vm472 = vcmp.ge.f32.partialorder %v464, 0.0
        %vm473 = vcmp.ge.f32.partialorder %v467, 0.0
        %v474 = vmul.f32 %v456, 0.01
        %v475 = vmul.f32 %v459, 0.01
        %v476 = vmul.f32 %v464, 0.01
        %v477 = vmul.f32 %v467, 0.01
        %v478 = vsel %vm470, %v456, %v474
        %v479 = vsel %vm471, %v459, %v475
        %v480 = vsel %vm472, %v464, %v476
        %v481 = vsel %vm473, %v467, %v477
        %v482 = vld [vmem:[%s4] sm:$0xf]
        %v483 = vld [vmem:[%s4 + $0x4] sm:$0xf]
        %v484 = vld [vmem:[%s4 + $0x8] sm:$0xf]
        %v485 = vld [vmem:[%s4 + $0xc] sm:$0xf]
        %v486 = vpack.c.bf16 %v479, %v478
        %v487 = vpack.c.bf16 %v481, %v480
        %v492 = vunpack.c.l.b16 %v482
        %v493 = vunpack.c.l.b16 %v483
        %v494 = vunpack.c.l.b16 %v484
        %v495 = vunpack.c.l.b16 %v485
        %v496 = vpack.c.b16 %v493, %v492
        %v497 = vpack.c.b16 %v495, %v494
        %v499 = vsel %vm342, %v496, 0
        %v502 = vsel %vm342, %v497, 0
        %504 = vmatprep.subr.bf16.mxu0 0
        %505 = vmatpush1.bf16.msra.mxu0 %v486
        %506 = vmatprep.subr.bf16.mxu0 0
        %507 = vmatpush1.bf16.msra.mxu0 %v487
        %508 = vmatprep.subr.bf16.mxu0 0
        %509 = vmatpush1.bf16.msra.mxu0 0
        %510 = vmatprep.subr.bf16.mxu0 0
        %511 = vmatpush1.bf16.msra.mxu0 0
        %512 = vmatprep.subr.bf16.mxu0 0
        %513 = vmatpush1.bf16.msra.mxu0 0
        %514 = vmatprep.subr.bf16.mxu0 0
        %515 = vmatpush1.bf16.msra.mxu0 0
        %516 = vmatprep.subr.bf16.mxu0 0
        %517 = vmatpush1.bf16.msra.mxu0 0
        %518 = vmatprep.subr.bf16.mxu0 0
        %519 = vmatpush1.bf16.msra.mxu0 0
        %520 = vmatprep.subr.bf16.mxu0 0
        %521 = vmatpush1.bf16.msra.mxu0 0
        %522 = vmatprep.subr.bf16.mxu0 0
        %523 = vmatpush1.bf16.msra.mxu0 0
        %524 = vmatprep.subr.bf16.mxu0 0
        %525 = vmatpush1.bf16.msra.mxu0 0
        %526 = vmatprep.subr.bf16.mxu0 0
        %527 = vmatpush1.bf16.msra.mxu0 0
        %528 = vmatprep.subr.bf16.mxu0 0
        %529 = vmatpush1.bf16.msra.mxu0 0
        %530 = vmatprep.subr.bf16.mxu0 0
        %531 = vmatpush1.bf16.msra.mxu0 0
        %532 = vmatprep.subr.bf16.mxu0 0
        %533 = vmatpush1.bf16.msra.mxu0 0
        %534 = vmatprep.subr.bf16.mxu0 0
        %535 = vmatpush1.bf16.msra.mxu0 0
        %536 = vmatprep.mubr.bf16.mxu0 0
        %537 = vmatmul.mubr.bf16.gmra.mrb[0].mxu0 %v499
        %v538 = vpop.f32.mrb[0].mxu0
        %v539 = vadd.f32 0.0, %v538
        %v540 = vpop.f32.mrb[0].mxu0
        %v541 = vpop.f32.mrb[0].mxu0
        %v542 = vadd.f32 0.0, %v541
        %v543 = vpop.f32.mrb[0].mxu0
        %544 = vmatprep.mubr.bf16.mxu0 0
        %545 = vmatmul.mubr.bf16.gmra.mrb[0].mxu0 %v502
        %v546 = vpop.f32.mrb[0].mxu0
        %v547 = vadd.f32 0.0, %v546
        %v548 = vpop.f32.mrb[0].mxu0
        %v549 = vpop.f32.mrb[0].mxu0
        %v550 = vadd.f32 0.0, %v549
        %v551 = vpop.f32.mrb[0].mxu0
        %552 = vdwg.mxu0
        %vm553 = vcmp.ge.f32.partialorder %v539, 0.0
        %vm554 = vcmp.ge.f32.partialorder %v542, 0.0
        %vm555 = vcmp.ge.f32.partialorder %v547, 0.0
        %vm556 = vcmp.ge.f32.partialorder %v550, 0.0
        %v557 = vmul.f32 %v539, 0.01
        %v558 = vmul.f32 %v542, 0.01
        %v559 = vmul.f32 %v547, 0.01
        %v560 = vmul.f32 %v550, 0.01
        %v561 = vsel %vm553, %v539, %v557
        %v562 = vsel %vm554, %v542, %v558
        %v563 = vsel %vm555, %v547, %v559
        %v564 = vsel %vm556, %v550, %v560
        %v565 = vld [vmem:[%s5] sm:$0xff]
        %v566 = vld [vmem:[%s5 + $0x8] sm:$0xff]
        %v567 = vld [vmem:[%s5 + $0x10] sm:$0xff]
        %v568 = vld [vmem:[%s5 + $0x18] sm:$0xff]
        %570 = vset.pattern.permute.xlu0 0
        %571 = vperm.xlu0 %570, %v565
        %v572 = vpop.permute.xlu0 %571
        %575 = vset.pattern.permute.xlu0 0
        %576 = vperm.xlu0 %575, %v566
        %v577 = vpop.permute.xlu0 %576
        %580 = vset.pattern.permute.xlu0 0
        %581 = vperm.xlu0 %580, %v567
        %v582 = vpop.permute.xlu0 %581
        %585 = vset.pattern.permute.xlu0 0
        %586 = vperm.xlu0 %585, %v568
        %v587 = vpop.permute.xlu0 %586
        %v589 = vmul.f32 %v561, %v572
        %v590 = vmul.f32 %v562, %v577
        %v591 = vmul.f32 %v563, %v582
        %v592 = vmul.f32 %v564, %v587
        %vm593 = vcmask 64512
        %v594 = vsel %vm593, %v589, 0.0
        %v595 = vsel %vm593, %v590, 0.0
        %v596 = vadd.f32 %v594, %v595
        %v597 = vsel %vm593, %v591, 0.0
        %v598 = vadd.f32 %v596, %v597
        %v599 = vsel %vm593, %v592, 0.0
        %v600 = vadd.f32 %v598, %v599
        %v601 = vrot.slane %v600, 4
        %v602 = vadd.f32 %v600, %v601
        %v603 = vrot.slane %v602, 2
        %v604 = vadd.f32 %v602, %v603
        %v605 = vrot.slane %v604, 1
        %v606 = vadd.f32 %v604, %v605
        %vm607 = vcmask 57344
        %608 = vst.msk [vmem:[%s288] sm:$0x1] %vm607, %v606
        %s609 = sand.u32 %s182, 1
        %s610 = scalar_lea.sflag [#allocation3], %s609
        %s611 = sand.u32 %s182, 1
        %s612 = scalar_lea.vmem [#allocation2], %s611
        // Predicated region
        $region45: #{tpu_custom_call.1} parent=43 // pred_check
          %p613 = pneg %p192
        $region46: #{tpu_custom_call.1} parent=43 // pred_check_branch
          %615 = sbr.rel (%p613) target = $region48
        $region47: #{tpu_custom_call.1} parent=43 // pred_region
          %s617 = ssub.s32 16, 16
          %618 = vsyncadd %s610, %s617
          %s619 = sadd.s32 %s25, %s24
          %s620 = smul.addr %s619, 16
          %s621 = scalar_lea.hbm %s6, %s620
          %s623 = sshll.u32 %s612, 4
          %s624 = int_to_ptr.vmem [resolvable:$true] %s623
          %626 = dma.vmem_to_hbm [thread:$0]  %s624, 16, %s621, %s610
        $region48: #{tpu_custom_call.1} parent=43 // pred_fallthru
          _
      $region44: #{tpu_custom_call.1} parent=5 // pred_fallthru
        _
      %p627 = scmp.le.s32.totalorder 2, %s15
      // Predicated region
      $region49: #{tpu_custom_call.1} parent=5 // pred_check
        %p628 = pneg %p627
      $region50: #{tpu_custom_call.1} parent=5 // pred_check_branch
        %630 = sbr.rel (%p628) target = $region52
      $region51: #{tpu_custom_call.1} parent=5 // pred_region
        %s631 = ssub.s32 %s15, 2
        // Predicated region
        $region53: #{tpu_custom_call.1} parent=51 // pred_check
          %p632 = pneg %p198
        $region54: #{tpu_custom_call.1} parent=51 // pred_check_branch
          %634 = sbr.rel (%p632) target = $region56
        $region55: #{tpu_custom_call.1} parent=51 // pred_region
          %s635 = sand.u32 %s183, 1
          %s636 = scalar_lea.sflag [#allocation3], %s635
          %s637 = sand.u32 %s183, 1
          %s638 = scalar_lea.vmem [#allocation2], %s637
          %639 = dma.done %s636, 16
        $region56: #{tpu_custom_call.1} parent=51 // pred_fallthru
          _
      $region52: #{tpu_custom_call.1} parent=5 // pred_fallthru
        _
    $region6: #{tpu_custom_call.1} parent=1 // loop_footer
      %s19 = sadd.s32 1, %s15
    $region7: #{tpu_custom_call.1} parent=1 // loop_footer_branch
      %14 = sbr.rel target = $region3
    $region8: #{tpu_custom_call.1} parent=1 // loop_exit
      _
    %640 = vsyncpa [#allocation3], 1
    %s641 = scalar_lea.sflag [#allocation3], 1
    %642 = vsyncpa %s641, 1

</llo_original>
